<compile_context>
chip_gen: v6e
topology: v6e:2x2x1
jax: 0.10.0
libtpu: 0.0.40
codegen_flags: <defaults>
</compile_context>

<pallas_src>
import functools

import jax
import jax.numpy as jnp
from jax.experimental import pallas as pl
from jax.experimental.pallas import tpu as pltpu


_VREG_BUDGET_F32 = 32 * 1024   # keep the (h_dim, TB) f32 activation within ~32 vregs (128 KiB)
_MIN_TILE = 256
_MAX_TILE = 2048


def _lane_tile(h_dim):
    """Largest lane (batch) tile such that the f32 activation stays vreg-resident."""
    tb = _VREG_BUDGET_F32 // max(h_dim, 8)
    tb = (tb // 128) * 128
    return int(max(_MIN_TILE, min(_MAX_TILE, tb)))


def _round_up(x, m):
    return (x + m - 1) // m * m


def critic_v_kernel(xT_ref, p_ref, out_ref, *, s_dim, h_dim):
    """One batch tile.

    xT_ref:  (s_dim, TB)                  state, batch on the LANE axis
    p_ref:   (3*h_dim, max(h_dim, 128))   packed parameter blob
    out_ref: (1, TB)                      lane-dense value output
    """
    xT = xT_ref[...]                         # (s_dim, TB)
    p = p_ref[...]                           # (3*h_dim, PW)

    b1 = p[2 * h_dim:3 * h_dim, 0:1]         # (h_dim, 1)
    b2 = p[2 * h_dim:3 * h_dim, 1:2]         # (h_dim, 1)
    w3 = p[2 * h_dim:3 * h_dim, 2:3]         # (h_dim, 1)  (fc3 weight as a column)
    b3 = p[2 * h_dim:2 * h_dim + 1, 3:4]     # (1, 1)

    # fc1 + ReLU: K = s_dim is tiny -> rank-1 broadcast FMAs on the VPU.
    h = b1 + p[0:h_dim, 0:1] * xT[0:1, :]    # (h_dim, TB)
    for k in range(1, s_dim):                # static python loop, s_dim small
        h = h + p[0:h_dim, k:k + 1] * xT[k:k + 1, :]
    h = jnp.maximum(h, 0.0)

    # fc2 + ReLU.
    if h_dim <= 64:
        # Tiny square matmul: h_dim rank-1 VPU FMAs beat a badly shaped MXU op
        # (a 32x32 LHS uses a sliver of the systolic array + fill/drain latency).
        acc = b2 + p[h_dim:2 * h_dim, 0:1] * h[0:1, :]
        for k in range(1, h_dim):
            acc = acc + p[h_dim:2 * h_dim, k:k + 1] * h[k:k + 1, :]
        h = acc
    else:
        # Large hidden dim: MXU with bf16 operands (single-pass), f32 accumulation.
        w2 = p[h_dim:2 * h_dim, 0:h_dim]
        h = jnp.dot(w2.astype(jnp.bfloat16), h.astype(jnp.bfloat16),
                    preferred_element_type=jnp.float32) + b2
    h = jnp.maximum(h, 0.0)

    # fc3 (N = 1): VPU multiply + sublane (XLU) reduce -> lane-dense (1, TB) result.
    v = jnp.sum(h * w3, axis=0, keepdims=True) + b3
    out_ref[...] = v.astype(out_ref.dtype)


@jax.jit
def critic_v_forward(state, packed):
    """state: (B, s_dim) f32, packed: (3*h_dim, max(h_dim,128)) f32 -> (B, 1) f32."""
    B, s_dim = state.shape
    h_dim = packed.shape[0] // 3
    kernel = functools.partial(critic_v_kernel, s_dim=s_dim, h_dim=h_dim)

    # Layout plumbing outside the kernel: batch on the lane axis.
    # TODO(synk): store / batch states as (s_dim, B) upstream to drop this transpose.
    xT = state.astype(jnp.float32).T                       # (s_dim, B)

    tile = _lane_tile(h_dim)
    single_call_max = 2 * tile   # one un-gridded call amortizes ~0.35us/step grid overhead

    flops = 2 * B * (s_dim * h_dim + h_dim * h_dim + h_dim)
    bytes_accessed = 4 * (B * s_dim + packed.size + B)
    ce = pl.CostEstimate(flops=flops, transcendentals=0,
                         bytes_accessed=bytes_accessed)

    if B <= single_call_max:
        # Single un-gridded call: 2 input DMAs, one lane-dense output store,
        # no pad / slice / grid-step overhead.  Best choice on 1-TC chips
        # (v5e/v6e) for essentially all realistic SAC batch sizes.
        out = pl.pallas_call(
            kernel,
            out_shape=jax.ShapeDtypeStruct((1, B), jnp.float32),
            in_specs=[
                pl.BlockSpec(xT.shape, lambda: (0, 0)),
                pl.BlockSpec(packed.shape, lambda: (0, 0)),
            ],
            out_specs=pl.BlockSpec((1, B), lambda: (0, 0)),
            cost_estimate=ce,
        )(xT, packed)
    else:
        # Very large batch: lane-tiled grid, weights resident (constant index_map).
        # "parallel" lets v7x shard the few fat steps across its 2 TensorCores.
        Bp = _round_up(B, tile)
        if Bp != B:
            xT = jnp.pad(xT, ((0, 0), (0, Bp - B)))
        out = pl.pallas_call(
            kernel,
            out_shape=jax.ShapeDtypeStruct((1, Bp), jnp.float32),
            grid=(Bp // tile,),
            in_specs=[
                pl.BlockSpec((s_dim, tile), lambda i: (0, i)),
                pl.BlockSpec(packed.shape, lambda i: (0, 0)),   # stays in VMEM
            ],
            out_specs=pl.BlockSpec((1, tile), lambda i: (0, i)),
            compiler_params=pltpu.CompilerParams(
                dimension_semantics=("parallel",)),
            cost_estimate=ce,
        )(xT, packed)
        out = out[:, :B]

    return out.reshape(B, 1)


def init_critic_v_params(key, s_dim, h_dim, init_w=0.003):
    """PyTorch-orientation params mirroring nn.Linear defaults + Critic_V.init_weights."""
    k1, k2, k3, k4, k5, k6 = jax.random.split(key, 6)

    bound1 = 1.0 / jnp.sqrt(s_dim)
    w1 = jax.random.uniform(k1, (h_dim, s_dim), jnp.float32, -bound1, bound1)
    b1 = jax.random.uniform(k2, (h_dim,), jnp.float32, -bound1, bound1)

    bound2 = 1.0 / jnp.sqrt(h_dim)
    w2 = jax.random.uniform(k3, (h_dim, h_dim), jnp.float32, -bound2, bound2)
    b2 = jax.random.uniform(k4, (h_dim,), jnp.float32, -bound2, bound2)

    # fc3 overridden by init_weights: U(-init_w, init_w)
    w3 = jax.random.uniform(k5, (1, h_dim), jnp.float32, -init_w, init_w)
    b3 = jax.random.uniform(k6, (1,), jnp.float32, -init_w, init_w)

    return w1, b1, w2, b2, w3, b3


def pack_params(w1, b1, w2, b2, w3, b3):
    """Pack all parameters into one (3*h_dim, max(h_dim,128)) f32 blob.

    Requires h_dim % 8 == 0 and h_dim >= max(s_dim, 4) so the three row
    sections stay 8-row aligned and the scalar columns fit.
    """
    h_dim, s_dim = w1.shape
    assert h_dim % 8 == 0 and h_dim >= max(s_dim, 4), (h_dim, s_dim)
    pw = max(h_dim, 128)   # lane-dense blob -> unmasked vector loads in-kernel
    blob = jnp.zeros((3 * h_dim, pw), jnp.float32)
    blob = blob.at[0:h_dim, 0:s_dim].set(w1.astype(jnp.float32))
    blob = blob.at[h_dim:2 * h_dim, 0:h_dim].set(w2.astype(jnp.float32))
    blob = blob.at[2 * h_dim:3 * h_dim, 0].set(b1.astype(jnp.float32))
    blob = blob.at[2 * h_dim:3 * h_dim, 1].set(b2.astype(jnp.float32))
    blob = blob.at[2 * h_dim:3 * h_dim, 2].set(w3.reshape(-1).astype(jnp.float32))
    blob = blob.at[2 * h_dim, 3].set(b3.reshape(()).astype(jnp.float32))
    return blob


def reference_forward(state, w1, b1, w2, b2, w3, b3):
    h = jnp.maximum(state @ w1.T + b1, 0.0)
    h = jnp.maximum(h @ w2.T + b2, 0.0)
    return h @ w3.T + b3


if __name__ == "__main__":
    # Pendulum-v0: s_dim = 3; small hidden dim.
    s_dim, h_dim = 3, 32

    key = jax.random.PRNGKey(0)
    kp, ks1, ks2, ks3 = jax.random.split(key, 4)

    params = init_critic_v_params(kp, s_dim, h_dim)
    packed = pack_params(*params)

    # Small batch -> single un-gridded call (lane-dense output, 2 DMAs).
    state_small = jax.random.normal(ks1, (8, s_dim), jnp.float32)
    val_small = jax.block_until_ready(critic_v_forward(state_small, packed))
    ref_small = reference_forward(state_small, *params)
    assert val_small.shape == (8, 1), val_small.shape
    assert jnp.allclose(val_small, ref_small, atol=2e-5, rtol=1e-4)

    # Typical SAC batch (1000) -> still ONE un-gridded call: no grid steps,
    # no pad, no slice (this was 4 grid steps in the previous version).
    state_med = jax.random.normal(ks2, (1000, s_dim), jnp.float32)
    val_med = jax.block_until_ready(critic_v_forward(state_med, packed))
    ref_med = reference_forward(state_med, *params)
    assert val_med.shape == (1000, 1), val_med.shape
    assert jnp.allclose(val_med, ref_med, atol=2e-5, rtol=1e-4)

    # Very large batch -> lane-tiled grid path (fat 1024-lane tiles, resident
    # weights, "parallel" axis so v7x can use both TensorCores).
    state_big = jax.random.normal(ks3, (2500, s_dim), jnp.float32)
    val_big = jax.block_until_ready(critic_v_forward(state_big, packed))
    ref_big = reference_forward(state_big, *params)
    assert val_big.shape == (2500, 1), val_big.shape
    assert jnp.allclose(val_big, ref_big, atol=2e-5, rtol=1e-4)

    print("KERNEL_OK")
</pallas_src>

<mosaic_0001>
module attributes {stable_mosaic.version = 11 : i64} {
  func.func @critic_v_kernel(%arg0: memref<3x8xf32, #tpu.memory_space<vmem>>, %arg1: memref<96x128xf32, #tpu.memory_space<vmem>>, %arg2: memref<1x8xf32, #tpu.memory_space<vmem>>) attributes {dimension_semantics = [], scalar_prefetch = 0 : i64, scratch_operands = 0 : i64, tpu.core_type = #tpu.core_type<tc>} {
    %c0 = arith.constant 0 : index
    %c0_0 = arith.constant 0 : index
    %0 = vector.load %arg0[%c0, %c0_0] : memref<3x8xf32, #tpu.memory_space<vmem>>, vector<3x8xf32>
    %c0_1 = arith.constant 0 : index
    %c0_2 = arith.constant 0 : index
    %1 = vector.load %arg1[%c0_1, %c0_2] : memref<96x128xf32, #tpu.memory_space<vmem>>, vector<96x128xf32>
    %2 = vector.extract_strided_slice %1 {offsets = [64, 0], sizes = [32, 1], strides = [1, 1]} : vector<96x128xf32> to vector<32x1xf32>
    %3 = vector.extract_strided_slice %1 {offsets = [64, 1], sizes = [32, 1], strides = [1, 1]} : vector<96x128xf32> to vector<32x1xf32>
    %4 = vector.extract_strided_slice %1 {offsets = [64, 2], sizes = [32, 1], strides = [1, 1]} : vector<96x128xf32> to vector<32x1xf32>
    %5 = vector.extract_strided_slice %1 {offsets = [64, 3], sizes = [1, 1], strides = [1, 1]} : vector<96x128xf32> to vector<1x1xf32>
    %6 = vector.extract_strided_slice %1 {offsets = [0, 0], sizes = [32, 1], strides = [1, 1]} : vector<96x128xf32> to vector<32x1xf32>
    %7 = vector.extract_strided_slice %0 {offsets = [0, 0], sizes = [1, 8], strides = [1, 1]} : vector<3x8xf32> to vector<1x8xf32>
    %8 = vector.broadcast %6 : vector<32x1xf32> to vector<32x8xf32>
    %9 = vector.broadcast %7 : vector<1x8xf32> to vector<32x8xf32>
    %10 = arith.mulf %8, %9 : vector<32x8xf32>
    %11 = vector.broadcast %2 : vector<32x1xf32> to vector<32x8xf32>
    %12 = arith.addf %11, %10 : vector<32x8xf32>
    %13 = vector.extract_strided_slice %1 {offsets = [0, 1], sizes = [32, 1], strides = [1, 1]} : vector<96x128xf32> to vector<32x1xf32>
    %14 = vector.extract_strided_slice %0 {offsets = [1, 0], sizes = [1, 8], strides = [1, 1]} : vector<3x8xf32> to vector<1x8xf32>
    %15 = vector.broadcast %13 : vector<32x1xf32> to vector<32x8xf32>
    %16 = vector.broadcast %14 : vector<1x8xf32> to vector<32x8xf32>
    %17 = arith.mulf %15, %16 : vector<32x8xf32>
    %18 = arith.addf %12, %17 : vector<32x8xf32>
    %19 = vector.extract_strided_slice %1 {offsets = [0, 2], sizes = [32, 1], strides = [1, 1]} : vector<96x128xf32> to vector<32x1xf32>
    %20 = vector.extract_strided_slice %0 {offsets = [2, 0], sizes = [1, 8], strides = [1, 1]} : vector<3x8xf32> to vector<1x8xf32>
    %21 = vector.broadcast %19 : vector<32x1xf32> to vector<32x8xf32>
    %22 = vector.broadcast %20 : vector<1x8xf32> to vector<32x8xf32>
    %23 = arith.mulf %21, %22 : vector<32x8xf32>
    %24 = arith.addf %18, %23 : vector<32x8xf32>
    %cst = arith.constant 0.000000e+00 : f32
    %25 = vector.broadcast %cst : f32 to vector<32x8xf32>
    %26 = arith.maximumf %24, %25 : vector<32x8xf32>
    %27 = vector.extract_strided_slice %1 {offsets = [32, 0], sizes = [32, 1], strides = [1, 1]} : vector<96x128xf32> to vector<32x1xf32>
    %28 = vector.extract_strided_slice %26 {offsets = [0, 0], sizes = [1, 8], strides = [1, 1]} : vector<32x8xf32> to vector<1x8xf32>
    %29 = vector.broadcast %27 : vector<32x1xf32> to vector<32x8xf32>
    %30 = vector.broadcast %28 : vector<1x8xf32> to vector<32x8xf32>
    %31 = arith.mulf %29, %30 : vector<32x8xf32>
    %32 = vector.broadcast %3 : vector<32x1xf32> to vector<32x8xf32>
    %33 = arith.addf %32, %31 : vector<32x8xf32>
    %34 = vector.extract_strided_slice %1 {offsets = [32, 1], sizes = [32, 1], strides = [1, 1]} : vector<96x128xf32> to vector<32x1xf32>
    %35 = vector.extract_strided_slice %26 {offsets = [1, 0], sizes = [1, 8], strides = [1, 1]} : vector<32x8xf32> to vector<1x8xf32>
    %36 = vector.broadcast %34 : vector<32x1xf32> to vector<32x8xf32>
    %37 = vector.broadcast %35 : vector<1x8xf32> to vector<32x8xf32>
    %38 = arith.mulf %36, %37 : vector<32x8xf32>
    %39 = arith.addf %33, %38 : vector<32x8xf32>
    %40 = vector.extract_strided_slice %1 {offsets = [32, 2], sizes = [32, 1], strides = [1, 1]} : vector<96x128xf32> to vector<32x1xf32>
    %41 = vector.extract_strided_slice %26 {offsets = [2, 0], sizes = [1, 8], strides = [1, 1]} : vector<32x8xf32> to vector<1x8xf32>
    %42 = vector.broadcast %40 : vector<32x1xf32> to vector<32x8xf32>
    %43 = vector.broadcast %41 : vector<1x8xf32> to vector<32x8xf32>
    %44 = arith.mulf %42, %43 : vector<32x8xf32>
    %45 = arith.addf %39, %44 : vector<32x8xf32>
    %46 = vector.extract_strided_slice %1 {offsets = [32, 3], sizes = [32, 1], strides = [1, 1]} : vector<96x128xf32> to vector<32x1xf32>
    %47 = vector.extract_strided_slice %26 {offsets = [3, 0], sizes = [1, 8], strides = [1, 1]} : vector<32x8xf32> to vector<1x8xf32>
    %48 = vector.broadcast %46 : vector<32x1xf32> to vector<32x8xf32>
    %49 = vector.broadcast %47 : vector<1x8xf32> to vector<32x8xf32>
    %50 = arith.mulf %48, %49 : vector<32x8xf32>
    %51 = arith.addf %45, %50 : vector<32x8xf32>
    %52 = vector.extract_strided_slice %1 {offsets = [32, 4], sizes = [32, 1], strides = [1, 1]} : vector<96x128xf32> to vector<32x1xf32>
    %53 = vector.extract_strided_slice %26 {offsets = [4, 0], sizes = [1, 8], strides = [1, 1]} : vector<32x8xf32> to vector<1x8xf32>
    %54 = vector.broadcast %52 : vector<32x1xf32> to vector<32x8xf32>
    %55 = vector.broadcast %53 : vector<1x8xf32> to vector<32x8xf32>
    %56 = arith.mulf %54, %55 : vector<32x8xf32>
    %57 = arith.addf %51, %56 : vector<32x8xf32>
    %58 = vector.extract_strided_slice %1 {offsets = [32, 5], sizes = [32, 1], strides = [1, 1]} : vector<96x128xf32> to vector<32x1xf32>
    %59 = vector.extract_strided_slice %26 {offsets = [5, 0], sizes = [1, 8], strides = [1, 1]} : vector<32x8xf32> to vector<1x8xf32>
    %60 = vector.broadcast %58 : vector<32x1xf32> to vector<32x8xf32>
    %61 = vector.broadcast %59 : vector<1x8xf32> to vector<32x8xf32>
    %62 = arith.mulf %60, %61 : vector<32x8xf32>
    %63 = arith.addf %57, %62 : vector<32x8xf32>
    %64 = vector.extract_strided_slice %1 {offsets = [32, 6], sizes = [32, 1], strides = [1, 1]} : vector<96x128xf32> to vector<32x1xf32>
    %65 = vector.extract_strided_slice %26 {offsets = [6, 0], sizes = [1, 8], strides = [1, 1]} : vector<32x8xf32> to vector<1x8xf32>
    %66 = vector.broadcast %64 : vector<32x1xf32> to vector<32x8xf32>
    %67 = vector.broadcast %65 : vector<1x8xf32> to vector<32x8xf32>
    %68 = arith.mulf %66, %67 : vector<32x8xf32>
    %69 = arith.addf %63, %68 : vector<32x8xf32>
    %70 = vector.extract_strided_slice %1 {offsets = [32, 7], sizes = [32, 1], strides = [1, 1]} : vector<96x128xf32> to vector<32x1xf32>
    %71 = vector.extract_strided_slice %26 {offsets = [7, 0], sizes = [1, 8], strides = [1, 1]} : vector<32x8xf32> to vector<1x8xf32>
    %72 = vector.broadcast %70 : vector<32x1xf32> to vector<32x8xf32>
    %73 = vector.broadcast %71 : vector<1x8xf32> to vector<32x8xf32>
    %74 = arith.mulf %72, %73 : vector<32x8xf32>
    %75 = arith.addf %69, %74 : vector<32x8xf32>
    %76 = vector.extract_strided_slice %1 {offsets = [32, 8], sizes = [32, 1], strides = [1, 1]} : vector<96x128xf32> to vector<32x1xf32>
    %77 = vector.extract_strided_slice %26 {offsets = [8, 0], sizes = [1, 8], strides = [1, 1]} : vector<32x8xf32> to vector<1x8xf32>
    %78 = vector.broadcast %76 : vector<32x1xf32> to vector<32x8xf32>
    %79 = vector.broadcast %77 : vector<1x8xf32> to vector<32x8xf32>
    %80 = arith.mulf %78, %79 : vector<32x8xf32>
    %81 = arith.addf %75, %80 : vector<32x8xf32>
    %82 = vector.extract_strided_slice %1 {offsets = [32, 9], sizes = [32, 1], strides = [1, 1]} : vector<96x128xf32> to vector<32x1xf32>
    %83 = vector.extract_strided_slice %26 {offsets = [9, 0], sizes = [1, 8], strides = [1, 1]} : vector<32x8xf32> to vector<1x8xf32>
    %84 = vector.broadcast %82 : vector<32x1xf32> to vector<32x8xf32>
    %85 = vector.broadcast %83 : vector<1x8xf32> to vector<32x8xf32>
    %86 = arith.mulf %84, %85 : vector<32x8xf32>
    %87 = arith.addf %81, %86 : vector<32x8xf32>
    %88 = vector.extract_strided_slice %1 {offsets = [32, 10], sizes = [32, 1], strides = [1, 1]} : vector<96x128xf32> to vector<32x1xf32>
    %89 = vector.extract_strided_slice %26 {offsets = [10, 0], sizes = [1, 8], strides = [1, 1]} : vector<32x8xf32> to vector<1x8xf32>
    %90 = vector.broadcast %88 : vector<32x1xf32> to vector<32x8xf32>
    %91 = vector.broadcast %89 : vector<1x8xf32> to vector<32x8xf32>
    %92 = arith.mulf %90, %91 : vector<32x8xf32>
    %93 = arith.addf %87, %92 : vector<32x8xf32>
    %94 = vector.extract_strided_slice %1 {offsets = [32, 11], sizes = [32, 1], strides = [1, 1]} : vector<96x128xf32> to vector<32x1xf32>
    %95 = vector.extract_strided_slice %26 {offsets = [11, 0], sizes = [1, 8], strides = [1, 1]} : vector<32x8xf32> to vector<1x8xf32>
    %96 = vector.broadcast %94 : vector<32x1xf32> to vector<32x8xf32>
    %97 = vector.broadcast %95 : vector<1x8xf32> to vector<32x8xf32>
    %98 = arith.mulf %96, %97 : vector<32x8xf32>
    %99 = arith.addf %93, %98 : vector<32x8xf32>
    %100 = vector.extract_strided_slice %1 {offsets = [32, 12], sizes = [32, 1], strides = [1, 1]} : vector<96x128xf32> to vector<32x1xf32>
    %101 = vector.extract_strided_slice %26 {offsets = [12, 0], sizes = [1, 8], strides = [1, 1]} : vector<32x8xf32> to vector<1x8xf32>
    %102 = vector.broadcast %100 : vector<32x1xf32> to vector<32x8xf32>
    %103 = vector.broadcast %101 : vector<1x8xf32> to vector<32x8xf32>
    %104 = arith.mulf %102, %103 : vector<32x8xf32>
    %105 = arith.addf %99, %104 : vector<32x8xf32>
    %106 = vector.extract_strided_slice %1 {offsets = [32, 13], sizes = [32, 1], strides = [1, 1]} : vector<96x128xf32> to vector<32x1xf32>
    %107 = vector.extract_strided_slice %26 {offsets = [13, 0], sizes = [1, 8], strides = [1, 1]} : vector<32x8xf32> to vector<1x8xf32>
    %108 = vector.broadcast %106 : vector<32x1xf32> to vector<32x8xf32>
    %109 = vector.broadcast %107 : vector<1x8xf32> to vector<32x8xf32>
    %110 = arith.mulf %108, %109 : vector<32x8xf32>
    %111 = arith.addf %105, %110 : vector<32x8xf32>
    %112 = vector.extract_strided_slice %1 {offsets = [32, 14], sizes = [32, 1], strides = [1, 1]} : vector<96x128xf32> to vector<32x1xf32>
    %113 = vector.extract_strided_slice %26 {offsets = [14, 0], sizes = [1, 8], strides = [1, 1]} : vector<32x8xf32> to vector<1x8xf32>
    %114 = vector.broadcast %112 : vector<32x1xf32> to vector<32x8xf32>
    %115 = vector.broadcast %113 : vector<1x8xf32> to vector<32x8xf32>
    %116 = arith.mulf %114, %115 : vector<32x8xf32>
    %117 = arith.addf %111, %116 : vector<32x8xf32>
    %118 = vector.extract_strided_slice %1 {offsets = [32, 15], sizes = [32, 1], strides = [1, 1]} : vector<96x128xf32> to vector<32x1xf32>
    %119 = vector.extract_strided_slice %26 {offsets = [15, 0], sizes = [1, 8], strides = [1, 1]} : vector<32x8xf32> to vector<1x8xf32>
    %120 = vector.broadcast %118 : vector<32x1xf32> to vector<32x8xf32>
    %121 = vector.broadcast %119 : vector<1x8xf32> to vector<32x8xf32>
    %122 = arith.mulf %120, %121 : vector<32x8xf32>
    %123 = arith.addf %117, %122 : vector<32x8xf32>
    %124 = vector.extract_strided_slice %1 {offsets = [32, 16], sizes = [32, 1], strides = [1, 1]} : vector<96x128xf32> to vector<32x1xf32>
    %125 = vector.extract_strided_slice %26 {offsets = [16, 0], sizes = [1, 8], strides = [1, 1]} : vector<32x8xf32> to vector<1x8xf32>
    %126 = vector.broadcast %124 : vector<32x1xf32> to vector<32x8xf32>
    %127 = vector.broadcast %125 : vector<1x8xf32> to vector<32x8xf32>
    %128 = arith.mulf %126, %127 : vector<32x8xf32>
    %129 = arith.addf %123, %128 : vector<32x8xf32>
    %130 = vector.extract_strided_slice %1 {offsets = [32, 17], sizes = [32, 1], strides = [1, 1]} : vector<96x128xf32> to vector<32x1xf32>
    %131 = vector.extract_strided_slice %26 {offsets = [17, 0], sizes = [1, 8], strides = [1, 1]} : vector<32x8xf32> to vector<1x8xf32>
    %132 = vector.broadcast %130 : vector<32x1xf32> to vector<32x8xf32>
    %133 = vector.broadcast %131 : vector<1x8xf32> to vector<32x8xf32>
    %134 = arith.mulf %132, %133 : vector<32x8xf32>
    %135 = arith.addf %129, %134 : vector<32x8xf32>
    %136 = vector.extract_strided_slice %1 {offsets = [32, 18], sizes = [32, 1], strides = [1, 1]} : vector<96x128xf32> to vector<32x1xf32>
    %137 = vector.extract_strided_slice %26 {offsets = [18, 0], sizes = [1, 8], strides = [1, 1]} : vector<32x8xf32> to vector<1x8xf32>
    %138 = vector.broadcast %136 : vector<32x1xf32> to vector<32x8xf32>
    %139 = vector.broadcast %137 : vector<1x8xf32> to vector<32x8xf32>
    %140 = arith.mulf %138, %139 : vector<32x8xf32>
    %141 = arith.addf %135, %140 : vector<32x8xf32>
    %142 = vector.extract_strided_slice %1 {offsets = [32, 19], sizes = [32, 1], strides = [1, 1]} : vector<96x128xf32> to vector<32x1xf32>
    %143 = vector.extract_strided_slice %26 {offsets = [19, 0], sizes = [1, 8], strides = [1, 1]} : vector<32x8xf32> to vector<1x8xf32>
    %144 = vector.broadcast %142 : vector<32x1xf32> to vector<32x8xf32>
    %145 = vector.broadcast %143 : vector<1x8xf32> to vector<32x8xf32>
    %146 = arith.mulf %144, %145 : vector<32x8xf32>
    %147 = arith.addf %141, %146 : vector<32x8xf32>
    %148 = vector.extract_strided_slice %1 {offsets = [32, 20], sizes = [32, 1], strides = [1, 1]} : vector<96x128xf32> to vector<32x1xf32>
    %149 = vector.extract_strided_slice %26 {offsets = [20, 0], sizes = [1, 8], strides = [1, 1]} : vector<32x8xf32> to vector<1x8xf32>
    %150 = vector.broadcast %148 : vector<32x1xf32> to vector<32x8xf32>
    %151 = vector.broadcast %149 : vector<1x8xf32> to vector<32x8xf32>
    %152 = arith.mulf %150, %151 : vector<32x8xf32>
    %153 = arith.addf %147, %152 : vector<32x8xf32>
    %154 = vector.extract_strided_slice %1 {offsets = [32, 21], sizes = [32, 1], strides = [1, 1]} : vector<96x128xf32> to vector<32x1xf32>
    %155 = vector.extract_strided_slice %26 {offsets = [21, 0], sizes = [1, 8], strides = [1, 1]} : vector<32x8xf32> to vector<1x8xf32>
    %156 = vector.broadcast %154 : vector<32x1xf32> to vector<32x8xf32>
    %157 = vector.broadcast %155 : vector<1x8xf32> to vector<32x8xf32>
    %158 = arith.mulf %156, %157 : vector<32x8xf32>
    %159 = arith.addf %153, %158 : vector<32x8xf32>
    %160 = vector.extract_strided_slice %1 {offsets = [32, 22], sizes = [32, 1], strides = [1, 1]} : vector<96x128xf32> to vector<32x1xf32>
    %161 = vector.extract_strided_slice %26 {offsets = [22, 0], sizes = [1, 8], strides = [1, 1]} : vector<32x8xf32> to vector<1x8xf32>
    %162 = vector.broadcast %160 : vector<32x1xf32> to vector<32x8xf32>
    %163 = vector.broadcast %161 : vector<1x8xf32> to vector<32x8xf32>
    %164 = arith.mulf %162, %163 : vector<32x8xf32>
    %165 = arith.addf %159, %164 : vector<32x8xf32>
    %166 = vector.extract_strided_slice %1 {offsets = [32, 23], sizes = [32, 1], strides = [1, 1]} : vector<96x128xf32> to vector<32x1xf32>
    %167 = vector.extract_strided_slice %26 {offsets = [23, 0], sizes = [1, 8], strides = [1, 1]} : vector<32x8xf32> to vector<1x8xf32>
    %168 = vector.broadcast %166 : vector<32x1xf32> to vector<32x8xf32>
    %169 = vector.broadcast %167 : vector<1x8xf32> to vector<32x8xf32>
    %170 = arith.mulf %168, %169 : vector<32x8xf32>
    %171 = arith.addf %165, %170 : vector<32x8xf32>
    %172 = vector.extract_strided_slice %1 {offsets = [32, 24], sizes = [32, 1], strides = [1, 1]} : vector<96x128xf32> to vector<32x1xf32>
    %173 = vector.extract_strided_slice %26 {offsets = [24, 0], sizes = [1, 8], strides = [1, 1]} : vector<32x8xf32> to vector<1x8xf32>
    %174 = vector.broadcast %172 : vector<32x1xf32> to vector<32x8xf32>
    %175 = vector.broadcast %173 : vector<1x8xf32> to vector<32x8xf32>
    %176 = arith.mulf %174, %175 : vector<32x8xf32>
    %177 = arith.addf %171, %176 : vector<32x8xf32>
    %178 = vector.extract_strided_slice %1 {offsets = [32, 25], sizes = [32, 1], strides = [1, 1]} : vector<96x128xf32> to vector<32x1xf32>
    %179 = vector.extract_strided_slice %26 {offsets = [25, 0], sizes = [1, 8], strides = [1, 1]} : vector<32x8xf32> to vector<1x8xf32>
    %180 = vector.broadcast %178 : vector<32x1xf32> to vector<32x8xf32>
    %181 = vector.broadcast %179 : vector<1x8xf32> to vector<32x8xf32>
    %182 = arith.mulf %180, %181 : vector<32x8xf32>
    %183 = arith.addf %177, %182 : vector<32x8xf32>
    %184 = vector.extract_strided_slice %1 {offsets = [32, 26], sizes = [32, 1], strides = [1, 1]} : vector<96x128xf32> to vector<32x1xf32>
    %185 = vector.extract_strided_slice %26 {offsets = [26, 0], sizes = [1, 8], strides = [1, 1]} : vector<32x8xf32> to vector<1x8xf32>
    %186 = vector.broadcast %184 : vector<32x1xf32> to vector<32x8xf32>
    %187 = vector.broadcast %185 : vector<1x8xf32> to vector<32x8xf32>
    %188 = arith.mulf %186, %187 : vector<32x8xf32>
    %189 = arith.addf %183, %188 : vector<32x8xf32>
    %190 = vector.extract_strided_slice %1 {offsets = [32, 27], sizes = [32, 1], strides = [1, 1]} : vector<96x128xf32> to vector<32x1xf32>
    %191 = vector.extract_strided_slice %26 {offsets = [27, 0], sizes = [1, 8], strides = [1, 1]} : vector<32x8xf32> to vector<1x8xf32>
    %192 = vector.broadcast %190 : vector<32x1xf32> to vector<32x8xf32>
    %193 = vector.broadcast %191 : vector<1x8xf32> to vector<32x8xf32>
    %194 = arith.mulf %192, %193 : vector<32x8xf32>
    %195 = arith.addf %189, %194 : vector<32x8xf32>
    %196 = vector.extract_strided_slice %1 {offsets = [32, 28], sizes = [32, 1], strides = [1, 1]} : vector<96x128xf32> to vector<32x1xf32>
    %197 = vector.extract_strided_slice %26 {offsets = [28, 0], sizes = [1, 8], strides = [1, 1]} : vector<32x8xf32> to vector<1x8xf32>
    %198 = vector.broadcast %196 : vector<32x1xf32> to vector<32x8xf32>
    %199 = vector.broadcast %197 : vector<1x8xf32> to vector<32x8xf32>
    %200 = arith.mulf %198, %199 : vector<32x8xf32>
    %201 = arith.addf %195, %200 : vector<32x8xf32>
    %202 = vector.extract_strided_slice %1 {offsets = [32, 29], sizes = [32, 1], strides = [1, 1]} : vector<96x128xf32> to vector<32x1xf32>
    %203 = vector.extract_strided_slice %26 {offsets = [29, 0], sizes = [1, 8], strides = [1, 1]} : vector<32x8xf32> to vector<1x8xf32>
    %204 = vector.broadcast %202 : vector<32x1xf32> to vector<32x8xf32>
    %205 = vector.broadcast %203 : vector<1x8xf32> to vector<32x8xf32>
    %206 = arith.mulf %204, %205 : vector<32x8xf32>
    %207 = arith.addf %201, %206 : vector<32x8xf32>
    %208 = vector.extract_strided_slice %1 {offsets = [32, 30], sizes = [32, 1], strides = [1, 1]} : vector<96x128xf32> to vector<32x1xf32>
    %209 = vector.extract_strided_slice %26 {offsets = [30, 0], sizes = [1, 8], strides = [1, 1]} : vector<32x8xf32> to vector<1x8xf32>
    %210 = vector.broadcast %208 : vector<32x1xf32> to vector<32x8xf32>
    %211 = vector.broadcast %209 : vector<1x8xf32> to vector<32x8xf32>
    %212 = arith.mulf %210, %211 : vector<32x8xf32>
    %213 = arith.addf %207, %212 : vector<32x8xf32>
    %214 = vector.extract_strided_slice %1 {offsets = [32, 31], sizes = [32, 1], strides = [1, 1]} : vector<96x128xf32> to vector<32x1xf32>
    %215 = vector.extract_strided_slice %26 {offsets = [31, 0], sizes = [1, 8], strides = [1, 1]} : vector<32x8xf32> to vector<1x8xf32>
    %216 = vector.broadcast %214 : vector<32x1xf32> to vector<32x8xf32>
    %217 = vector.broadcast %215 : vector<1x8xf32> to vector<32x8xf32>
    %218 = arith.mulf %216, %217 : vector<32x8xf32>
    %219 = arith.addf %213, %218 : vector<32x8xf32>
    %cst_3 = arith.constant 0.000000e+00 : f32
    %220 = vector.broadcast %cst_3 : f32 to vector<32x8xf32>
    %221 = arith.maximumf %219, %220 : vector<32x8xf32>
    %222 = vector.broadcast %4 : vector<32x1xf32> to vector<32x8xf32>
    %223 = arith.mulf %221, %222 : vector<32x8xf32>
    %cst_4 = arith.constant dense<0.000000e+00> : vector<8xf32>
    %224 = vector.multi_reduction <add>, %223, %cst_4 [0] : vector<32x8xf32> to vector<8xf32>
    %225 = vector.shape_cast %224 : vector<8xf32> to vector<1x8xf32>
    %226 = vector.broadcast %5 : vector<1x1xf32> to vector<1x8xf32>
    %227 = arith.addf %225, %226 : vector<1x8xf32>
    %c0_5 = arith.constant 0 : index
    %c0_6 = arith.constant 0 : index
    %228 = vector.load %arg2[%c0_5, %c0_6] : memref<1x8xf32, #tpu.memory_space<vmem>>, vector<1x8xf32>
    tpu.vector_store %arg2[%c0_5, %c0_6], %227 {strides = array<i32>} : memref<1x8xf32, #tpu.memory_space<vmem>>, vector<1x8xf32>,
    return
  }
}

</mosaic_0001>

<llo_original>
// kernel: critic_v_forward.1
$region0: #{critic_v_forward.1}
  #allocation0 [shape = 'u32[]', space=smem, size = 0x4, offset = 0x4, fixed_abs, tag = 'smem constant byte address 0x4 - core index']
  #allocation1 [shape = 'u32[144,128]{1,0:T(1,128)}', space=vmem, size = 0x12000, scoped, tag = 'internal scratch']
  %s0 = inlined_call_operand.hbm [shape: f32[3,8], index: 0, kind: input, shape index: {}]
  %s1 = inlined_call_operand.hbm [shape: f32[96,128], index: 1, kind: input, shape index: {}]
  %s2 = inlined_call_operand.hbm [shape: f32[1,8], index: 2, kind: output, shape index: {}]
  %s3 = sld [smem:[#allocation0]]
  $region26: #{critic_v_forward.1} parent=0
    _
  %s5 = ssub.s32 1, %s3
  %s6 = scalar_select 0, %s5, %s3
  $region1: #{critic_v_forward.1} parent=0
    #allocation2 [shape = 'u8[2048]{0}', space=vmem, size = 0x800, scoped, tag = 'input window, operand 0, single buffered']
    #allocation3 [shape = 's32[1]{0}', space=sflag, size = 0x4, scoped, tag = 'scoped memory for critic_v_forward.1']
    #allocation4 [shape = 's32[1]{0}', space=sflag, size = 0x4, scoped, tag = 'scoped memory for critic_v_forward.1']
    #allocation5 [shape = 'u8[49152]{0}', space=vmem, size = 0xc000, scoped, tag = 'input window, operand 1, single buffered']
    #allocation6 [shape = 's32[1]{0}', space=sflag, size = 0x4, scoped, tag = 'scoped memory for critic_v_forward.1']
    #allocation7 [shape = 'u8[512]{0}', space=vmem, size = 0x400, scoped, tag = 'output window, operand 0, single buffered']
    %7 = vsyncpa [#allocation3], 0
    %8 = vsyncpa [#allocation6], 0
    %9 = vsyncpa [#allocation4], 0
    // Predicated region
    $region2: #{critic_v_forward.1} parent=1 // pred_check
      _
    $region3: #{critic_v_forward.1} parent=1 // pred_check_branch
      %11 = sbr.rel (0) target = $region5
    $region4: #{critic_v_forward.1} parent=1 // pred_region
      %s13 = ssub.s32 64, 64
      %14 = vsyncadd [#allocation3], %s13
      %s16 = sshll.u32 [#allocation2], 4
      %s17 = int_to_ptr.vmem [resolvable:$true] %s16
      %19 = dma.hbm_to_vmem [thread:$0]  %s0, 64, %s17, [#allocation3]
    $region5: #{critic_v_forward.1} parent=1 // pred_fallthru
      _
    // Predicated region
    $region6: #{critic_v_forward.1} parent=1 // pred_check
      _
    $region7: #{critic_v_forward.1} parent=1 // pred_check_branch
      %21 = sbr.rel (0) target = $region9
    $region8: #{critic_v_forward.1} parent=1 // pred_region
      %s23 = ssub.s32 1536, 1536
      %24 = vsyncadd [#allocation6], %s23
      %s25 = sshll.u32 [#allocation5], 4
      %s26 = int_to_ptr.vmem [resolvable:$true] %s25
      %31 = dma.hbm_to_vmem [thread:$0]  %s1, 1536, %s26, [#allocation6], 128, 128, 8
    $region9: #{critic_v_forward.1} parent=1 // pred_fallthru
      _
    // Predicated region
    $region10: #{critic_v_forward.1} parent=1 // pred_check
      _
    $region11: #{critic_v_forward.1} parent=1 // pred_check_branch
      %33 = sbr.rel (0) target = $region13
    $region12: #{critic_v_forward.1} parent=1 // pred_region
      %34 = dma.done [#allocation3], 64
    $region13: #{critic_v_forward.1} parent=1 // pred_fallthru
      _
    // Predicated region
    $region14: #{critic_v_forward.1} parent=1 // pred_check
      _
    $region15: #{critic_v_forward.1} parent=1 // pred_check_branch
      %36 = sbr.rel (0) target = $region17
    $region16: #{critic_v_forward.1} parent=1 // pred_region
      %37 = dma.done [#allocation6], 1536
    $region17: #{critic_v_forward.1} parent=1 // pred_fallthru
      _
    %v38 = vld [vmem:[#allocation2] sm:$0x7]
    %v39 = vld [vmem:[#allocation5] sm:$0xff]
    %v40 = vld [vmem:[#allocation5 + $0x8] sm:$0xff]
    %v41 = vld [vmem:[#allocation5 + $0x10] sm:$0xff]
    %v42 = vld [vmem:[#allocation5 + $0x18] sm:$0xff]
    %v43 = vld [vmem:[#allocation5 + $0x20] sm:$0xff]
    %v44 = vld [vmem:[#allocation5 + $0x28] sm:$0xff]
    %v45 = vld [vmem:[#allocation5 + $0x30] sm:$0xff]
    %v46 = vld [vmem:[#allocation5 + $0x38] sm:$0xff]
    %v47 = vld [vmem:[#allocation5 + $0x40] sm:$0xff]
    %v48 = vld [vmem:[#allocation5 + $0x48] sm:$0xff]
    %v49 = vld [vmem:[#allocation5 + $0x50] sm:$0xff]
    %v50 = vld [vmem:[#allocation5 + $0x58] sm:$0xff]
    %52 = vset.pattern.permute.xlu0 0
    %53 = vperm.xlu0 %52, %v39
    %v54 = vpop.permute.xlu0 %53
    %57 = vset.pattern.permute.xlu0 0
    %58 = vperm.xlu0 %57, %v40
    %v59 = vpop.permute.xlu0 %58
    %62 = vset.pattern.permute.xlu0 0
    %63 = vperm.xlu0 %62, %v41
    %v64 = vpop.permute.xlu0 %63
    %67 = vset.pattern.permute.xlu0 0
    %68 = vperm.xlu0 %67, %v42
    %v69 = vpop.permute.xlu0 %68
    %v71 = vlaneseq
    %v72 = vshrl.u32 %v71, 7
    %v73 = vsub.s32 0, %v72
    %v74 = vrot.slane %v38, %v73
    %v75 = vmul.f32 %v54, %v74
    %v76 = vmul.f32 %v59, %v74
    %v77 = vmul.f32 %v64, %v74
    %v78 = vmul.f32 %v69, %v74
    %80 = vset.pattern.permute.xlu0 0
    %81 = vperm.xlu0 %80, %v47
    %v82 = vpop.permute.xlu0 %81
    %85 = vset.pattern.permute.xlu0 0
    %86 = vperm.xlu0 %85, %v48
    %v87 = vpop.permute.xlu0 %86
    %90 = vset.pattern.permute.xlu0 0
    %91 = vperm.xlu0 %90, %v49
    %v92 = vpop.permute.xlu0 %91
    %95 = vset.pattern.permute.xlu0 0
    %96 = vperm.xlu0 %95, %v50
    %v97 = vpop.permute.xlu0 %96
    %v99 = vadd.f32 %v82, %v75
    %v100 = vadd.f32 %v87, %v76
    %v101 = vadd.f32 %v92, %v77
    %v102 = vadd.f32 %v97, %v78
    %103 = vset.pattern.permute.xlu0 1
    %104 = vperm.xlu0 %103, %v39
    %v105 = vpop.permute.xlu0 %104
    %107 = vset.pattern.permute.xlu0 1
    %108 = vperm.xlu0 %107, %v40
    %v109 = vpop.permute.xlu0 %108
    %111 = vset.pattern.permute.xlu0 1
    %112 = vperm.xlu0 %111, %v41
    %v113 = vpop.permute.xlu0 %112
    %115 = vset.pattern.permute.xlu0 1
    %116 = vperm.xlu0 %115, %v42
    %v117 = vpop.permute.xlu0 %116
    %v119 = vlaneseq
    %v120 = vshrl.u32 %v119, 7
    %v121 = vsub.s32 1, %v120
    %v122 = vrot.slane %v38, %v121
    %v123 = vmul.f32 %v105, %v122
    %v124 = vmul.f32 %v109, %v122
    %v125 = vmul.f32 %v113, %v122
    %v126 = vmul.f32 %v117, %v122
    %v127 = vadd.f32 %v99, %v123
    %v128 = vadd.f32 %v100, %v124
    %v129 = vadd.f32 %v101, %v125
    %v130 = vadd.f32 %v102, %v126
    %131 = vset.pattern.permute.xlu0 2
    %132 = vperm.xlu0 %131, %v39
    %v133 = vpop.permute.xlu0 %132
    %135 = vset.pattern.permute.xlu0 2
    %136 = vperm.xlu0 %135, %v40
    %v137 = vpop.permute.xlu0 %136
    %139 = vset.pattern.permute.xlu0 2
    %140 = vperm.xlu0 %139, %v41
    %v141 = vpop.permute.xlu0 %140
    %143 = vset.pattern.permute.xlu0 2
    %144 = vperm.xlu0 %143, %v42
    %v145 = vpop.permute.xlu0 %144
    %v147 = vlaneseq
    %v148 = vshrl.u32 %v147, 7
    %v149 = vsub.s32 2, %v148
    %v150 = vrot.slane %v38, %v149
    %v151 = vmul.f32 %v133, %v150
    %v152 = vmul.f32 %v137, %v150
    %v153 = vmul.f32 %v141, %v150
    %v154 = vmul.f32 %v145, %v150
    %v155 = vadd.f32 %v127, %v151
    %v156 = vadd.f32 %v128, %v152
    %v157 = vadd.f32 %v129, %v153
    %v158 = vadd.f32 %v130, %v154
    %v159 = vmax.f32 %v155, 0.0
    %v160 = vmax.f32 %v156, 0.0
    %v161 = vmax.f32 %v157, 0.0
    %v162 = vmax.f32 %v158, 0.0
    %164 = vset.pattern.permute.xlu0 0
    %165 = vperm.xlu0 %164, %v43
    %v166 = vpop.permute.xlu0 %165
    %169 = vset.pattern.permute.xlu0 0
    %170 = vperm.xlu0 %169, %v44
    %v171 = vpop.permute.xlu0 %170
    %174 = vset.pattern.permute.xlu0 0
    %175 = vperm.xlu0 %174, %v45
    %v176 = vpop.permute.xlu0 %175
    %179 = vset.pattern.permute.xlu0 0
    %180 = vperm.xlu0 %179, %v46
    %v181 = vpop.permute.xlu0 %180
    %v183 = vlaneseq
    %v184 = vshrl.u32 %v183, 7
    %v185 = vsub.s32 0, %v184
    %v186 = vrot.slane %v159, %v185
    %v187 = vmul.f32 %v166, %v186
    %v188 = vmul.f32 %v171, %v186
    %v189 = vmul.f32 %v176, %v186
    %v190 = vmul.f32 %v181, %v186
    %191 = vset.pattern.permute.xlu0 1
    %192 = vperm.xlu0 %191, %v47
    %v193 = vpop.permute.xlu0 %192
    %195 = vset.pattern.permute.xlu0 1
    %196 = vperm.xlu0 %195, %v48
    %v197 = vpop.permute.xlu0 %196
    %199 = vset.pattern.permute.xlu0 1
    %200 = vperm.xlu0 %199, %v49
    %v201 = vpop.permute.xlu0 %200
    %203 = vset.pattern.permute.xlu0 1
    %204 = vperm.xlu0 %203, %v50
    %v205 = vpop.permute.xlu0 %204
    %v207 = vadd.f32 %v193, %v187
    %v208 = vadd.f32 %v197, %v188
    %v209 = vadd.f32 %v201, %v189
    %v210 = vadd.f32 %v205, %v190
    %211 = vset.pattern.permute.xlu0 1
    %212 = vperm.xlu0 %211, %v43
    %v213 = vpop.permute.xlu0 %212
    %215 = vset.pattern.permute.xlu0 1
    %216 = vperm.xlu0 %215, %v44
    %v217 = vpop.permute.xlu0 %216
    %219 = vset.pattern.permute.xlu0 1
    %220 = vperm.xlu0 %219, %v45
    %v221 = vpop.permute.xlu0 %220
    %223 = vset.pattern.permute.xlu0 1
    %224 = vperm.xlu0 %223, %v46
    %v225 = vpop.permute.xlu0 %224
    %v227 = vlaneseq
    %v228 = vshrl.u32 %v227, 7
    %v229 = vsub.s32 1, %v228
    %v230 = vrot.slane %v159, %v229
    %v231 = vmul.f32 %v213, %v230
    %v232 = vmul.f32 %v217, %v230
    %v233 = vmul.f32 %v221, %v230
    %v234 = vmul.f32 %v225, %v230
    %v235 = vadd.f32 %v207, %v231
    %v236 = vadd.f32 %v208, %v232
    %v237 = vadd.f32 %v209, %v233
    %v238 = vadd.f32 %v210, %v234
    %239 = vset.pattern.permute.xlu0 2
    %240 = vperm.xlu0 %239, %v43
    %v241 = vpop.permute.xlu0 %240
    %243 = vset.pattern.permute.xlu0 2
    %244 = vperm.xlu0 %243, %v44
    %v245 = vpop.permute.xlu0 %244
    %247 = vset.pattern.permute.xlu0 2
    %248 = vperm.xlu0 %247, %v45
    %v249 = vpop.permute.xlu0 %248
    %251 = vset.pattern.permute.xlu0 2
    %252 = vperm.xlu0 %251, %v46
    %v253 = vpop.permute.xlu0 %252
    %v255 = vlaneseq
    %v256 = vshrl.u32 %v255, 7
    %v257 = vsub.s32 2, %v256
    %v258 = vrot.slane %v159, %v257
    %v259 = vmul.f32 %v241, %v258
    %v260 = vmul.f32 %v245, %v258
    %v261 = vmul.f32 %v249, %v258
    %v262 = vmul.f32 %v253, %v258
    %v263 = vadd.f32 %v235, %v259
    %v264 = vadd.f32 %v236, %v260
    %v265 = vadd.f32 %v237, %v261
    %v266 = vadd.f32 %v238, %v262
    %267 = vset.pattern.permute.xlu0 3
    %268 = vperm.xlu0 %267, %v43
    %v269 = vpop.permute.xlu0 %268
    %271 = vset.pattern.permute.xlu0 3
    %272 = vperm.xlu0 %271, %v44
    %v273 = vpop.permute.xlu0 %272
    %275 = vset.pattern.permute.xlu0 3
    %276 = vperm.xlu0 %275, %v45
    %v277 = vpop.permute.xlu0 %276
    %279 = vset.pattern.permute.xlu0 3
    %280 = vperm.xlu0 %279, %v46
    %v281 = vpop.permute.xlu0 %280
    %v283 = vlaneseq
    %v284 = vshrl.u32 %v283, 7
    %v285 = vsub.s32 3, %v284
    %v286 = vrot.slane %v159, %v285
    %v287 = vmul.f32 %v269, %v286
    %v288 = vmul.f32 %v273, %v286
    %v289 = vmul.f32 %v277, %v286
    %v290 = vmul.f32 %v281, %v286
    %v291 = vadd.f32 %v263, %v287
    %v292 = vadd.f32 %v264, %v288
    %v293 = vadd.f32 %v265, %v289
    %v294 = vadd.f32 %v266, %v290
    %295 = vset.pattern.permute.xlu0 4
    %296 = vperm.xlu0 %295, %v43
    %v297 = vpop.permute.xlu0 %296
    %299 = vset.pattern.permute.xlu0 4
    %300 = vperm.xlu0 %299, %v44
    %v301 = vpop.permute.xlu0 %300
    %303 = vset.pattern.permute.xlu0 4
    %304 = vperm.xlu0 %303, %v45
    %v305 = vpop.permute.xlu0 %304
    %307 = vset.pattern.permute.xlu0 4
    %308 = vperm.xlu0 %307, %v46
    %v309 = vpop.permute.xlu0 %308
    %v311 = vlaneseq
    %v312 = vshrl.u32 %v311, 7
    %v313 = vsub.s32 4, %v312
    %v314 = vrot.slane %v159, %v313
    %v315 = vmul.f32 %v297, %v314
    %v316 = vmul.f32 %v301, %v314
    %v317 = vmul.f32 %v305, %v314
    %v318 = vmul.f32 %v309, %v314
    %v319 = vadd.f32 %v291, %v315
    %v320 = vadd.f32 %v292, %v316
    %v321 = vadd.f32 %v293, %v317
    %v322 = vadd.f32 %v294, %v318
    %323 = vset.pattern.permute.xlu0 5
    %324 = vperm.xlu0 %323, %v43
    %v325 = vpop.permute.xlu0 %324
    %327 = vset.pattern.permute.xlu0 5
    %328 = vperm.xlu0 %327, %v44
    %v329 = vpop.permute.xlu0 %328
    %331 = vset.pattern.permute.xlu0 5
    %332 = vperm.xlu0 %331, %v45
    %v333 = vpop.permute.xlu0 %332
    %335 = vset.pattern.permute.xlu0 5
    %336 = vperm.xlu0 %335, %v46
    %v337 = vpop.permute.xlu0 %336
    %v339 = vlaneseq
    %v340 = vshrl.u32 %v339, 7
    %v341 = vsub.s32 5, %v340
    %v342 = vrot.slane %v159, %v341
    %v343 = vmul.f32 %v325, %v342
    %v344 = vmul.f32 %v329, %v342
    %v345 = vmul.f32 %v333, %v342
    %v346 = vmul.f32 %v337, %v342
    %v347 = vadd.f32 %v319, %v343
    %v348 = vadd.f32 %v320, %v344
    %v349 = vadd.f32 %v321, %v345
    %v350 = vadd.f32 %v322, %v346
    %351 = vset.pattern.permute.xlu0 6
    %352 = vperm.xlu0 %351, %v43
    %v353 = vpop.permute.xlu0 %352
    %355 = vset.pattern.permute.xlu0 6
    %356 = vperm.xlu0 %355, %v44
    %v357 = vpop.permute.xlu0 %356
    %359 = vset.pattern.permute.xlu0 6
    %360 = vperm.xlu0 %359, %v45
    %v361 = vpop.permute.xlu0 %360
    %363 = vset.pattern.permute.xlu0 6
    %364 = vperm.xlu0 %363, %v46
    %v365 = vpop.permute.xlu0 %364
    %v367 = vlaneseq
    %v368 = vshrl.u32 %v367, 7
    %v369 = vsub.s32 6, %v368
    %v370 = vrot.slane %v159, %v369
    %v371 = vmul.f32 %v353, %v370
    %v372 = vmul.f32 %v357, %v370
    %v373 = vmul.f32 %v361, %v370
    %v374 = vmul.f32 %v365, %v370
    %v375 = vadd.f32 %v347, %v371
    %v376 = vadd.f32 %v348, %v372
    %v377 = vadd.f32 %v349, %v373
    %v378 = vadd.f32 %v350, %v374
    %379 = vset.pattern.permute.xlu0 7
    %380 = vperm.xlu0 %379, %v43
    %v381 = vpop.permute.xlu0 %380
    %383 = vset.pattern.permute.xlu0 7
    %384 = vperm.xlu0 %383, %v44
    %v385 = vpop.permute.xlu0 %384
    %387 = vset.pattern.permute.xlu0 7
    %388 = vperm.xlu0 %387, %v45
    %v389 = vpop.permute.xlu0 %388
    %391 = vset.pattern.permute.xlu0 7
    %392 = vperm.xlu0 %391, %v46
    %v393 = vpop.permute.xlu0 %392
    %v395 = vlaneseq
    %v396 = vshrl.u32 %v395, 7
    %v397 = vsub.s32 7, %v396
    %v398 = vrot.slane %v159, %v397
    %v399 = vmul.f32 %v381, %v398
    %v400 = vmul.f32 %v385, %v398
    %v401 = vmul.f32 %v389, %v398
    %v402 = vmul.f32 %v393, %v398
    %v403 = vadd.f32 %v375, %v399
    %v404 = vadd.f32 %v376, %v400
    %v405 = vadd.f32 %v377, %v401
    %v406 = vadd.f32 %v378, %v402
    %407 = vset.pattern.permute.xlu0 8
    %408 = vperm.xlu0 %407, %v43
    %v409 = vpop.permute.xlu0 %408
    %411 = vset.pattern.permute.xlu0 8
    %412 = vperm.xlu0 %411, %v44
    %v413 = vpop.permute.xlu0 %412
    %415 = vset.pattern.permute.xlu0 8
    %416 = vperm.xlu0 %415, %v45
    %v417 = vpop.permute.xlu0 %416
    %419 = vset.pattern.permute.xlu0 8
    %420 = vperm.xlu0 %419, %v46
    %v421 = vpop.permute.xlu0 %420
    %v423 = vlaneseq
    %v424 = vshrl.u32 %v423, 7
    %v425 = vsub.s32 0, %v424
    %v426 = vrot.slane %v160, %v425
    %v427 = vmul.f32 %v409, %v426
    %v428 = vmul.f32 %v413, %v426
    %v429 = vmul.f32 %v417, %v426
    %v430 = vmul.f32 %v421, %v426
    %v431 = vadd.f32 %v403, %v427
    %v432 = vadd.f32 %v404, %v428
    %v433 = vadd.f32 %v405, %v429
    %v434 = vadd.f32 %v406, %v430
    %435 = vset.pattern.permute.xlu0 9
    %436 = vperm.xlu0 %435, %v43
    %v437 = vpop.permute.xlu0 %436
    %439 = vset.pattern.permute.xlu0 9
    %440 = vperm.xlu0 %439, %v44
    %v441 = vpop.permute.xlu0 %440
    %443 = vset.pattern.permute.xlu0 9
    %444 = vperm.xlu0 %443, %v45
    %v445 = vpop.permute.xlu0 %444
    %447 = vset.pattern.permute.xlu0 9
    %448 = vperm.xlu0 %447, %v46
    %v449 = vpop.permute.xlu0 %448
    %v451 = vlaneseq
    %v452 = vshrl.u32 %v451, 7
    %v453 = vsub.s32 1, %v452
    %v454 = vrot.slane %v160, %v453
    %v455 = vmul.f32 %v437, %v454
    %v456 = vmul.f32 %v441, %v454
    %v457 = vmul.f32 %v445, %v454
    %v458 = vmul.f32 %v449, %v454
    %v459 = vadd.f32 %v431, %v455
    %v460 = vadd.f32 %v432, %v456
    %v461 = vadd.f32 %v433, %v457
    %v462 = vadd.f32 %v434, %v458
    %463 = vset.pattern.permute.xlu0 10
    %464 = vperm.xlu0 %463, %v43
    %v465 = vpop.permute.xlu0 %464
    %467 = vset.pattern.permute.xlu0 10
    %468 = vperm.xlu0 %467, %v44
    %v469 = vpop.permute.xlu0 %468
    %471 = vset.pattern.permute.xlu0 10
    %472 = vperm.xlu0 %471, %v45
    %v473 = vpop.permute.xlu0 %472
    %475 = vset.pattern.permute.xlu0 10
    %476 = vperm.xlu0 %475, %v46
    %v477 = vpop.permute.xlu0 %476
    %v479 = vlaneseq
    %v480 = vshrl.u32 %v479, 7
    %v481 = vsub.s32 2, %v480
    %v482 = vrot.slane %v160, %v481
    %v483 = vmul.f32 %v465, %v482
    %v484 = vmul.f32 %v469, %v482
    %v485 = vmul.f32 %v473, %v482
    %v486 = vmul.f32 %v477, %v482
    %v487 = vadd.f32 %v459, %v483
    %v488 = vadd.f32 %v460, %v484
    %v489 = vadd.f32 %v461, %v485
    %v490 = vadd.f32 %v462, %v486
    %491 = vset.pattern.permute.xlu0 11
    %492 = vperm.xlu0 %491, %v43
    %v493 = vpop.permute.xlu0 %492
    %495 = vset.pattern.permute.xlu0 11
    %496 = vperm.xlu0 %495, %v44
    %v497 = vpop.permute.xlu0 %496
    %499 = vset.pattern.permute.xlu0 11
    %500 = vperm.xlu0 %499, %v45
    %v501 = vpop.permute.xlu0 %500
    %503 = vset.pattern.permute.xlu0 11
    %504 = vperm.xlu0 %503, %v46
    %v505 = vpop.permute.xlu0 %504
    %v507 = vlaneseq
    %v508 = vshrl.u32 %v507, 7
    %v509 = vsub.s32 3, %v508
    %v510 = vrot.slane %v160, %v509
    %v511 = vmul.f32 %v493, %v510
    %v512 = vmul.f32 %v497, %v510
    %v513 = vmul.f32 %v501, %v510
    %v514 = vmul.f32 %v505, %v510
    %v515 = vadd.f32 %v487, %v511
    %v516 = vadd.f32 %v488, %v512
    %v517 = vadd.f32 %v489, %v513
    %v518 = vadd.f32 %v490, %v514
    %519 = vset.pattern.permute.xlu0 12
    %520 = vperm.xlu0 %519, %v43
    %v521 = vpop.permute.xlu0 %520
    %523 = vset.pattern.permute.xlu0 12
    %524 = vperm.xlu0 %523, %v44
    %v525 = vpop.permute.xlu0 %524
    %527 = vset.pattern.permute.xlu0 12
    %528 = vperm.xlu0 %527, %v45
    %v529 = vpop.permute.xlu0 %528
    %531 = vset.pattern.permute.xlu0 12
    %532 = vperm.xlu0 %531, %v46
    %v533 = vpop.permute.xlu0 %532
    %v535 = vlaneseq
    %v536 = vshrl.u32 %v535, 7
    %v537 = vsub.s32 4, %v536
    %v538 = vrot.slane %v160, %v537
    %v539 = vmul.f32 %v521, %v538
    %v540 = vmul.f32 %v525, %v538
    %v541 = vmul.f32 %v529, %v538
    %v542 = vmul.f32 %v533, %v538
    %v543 = vadd.f32 %v515, %v539
    %v544 = vadd.f32 %v516, %v540
    %v545 = vadd.f32 %v517, %v541
    %v546 = vadd.f32 %v518, %v542
    %547 = vset.pattern.permute.xlu0 13
    %548 = vperm.xlu0 %547, %v43
    %v549 = vpop.permute.xlu0 %548
    %551 = vset.pattern.permute.xlu0 13
    %552 = vperm.xlu0 %551, %v44
    %v553 = vpop.permute.xlu0 %552
    %555 = vset.pattern.permute.xlu0 13
    %556 = vperm.xlu0 %555, %v45
    %v557 = vpop.permute.xlu0 %556
    %559 = vset.pattern.permute.xlu0 13
    %560 = vperm.xlu0 %559, %v46
    %v561 = vpop.permute.xlu0 %560
    %v563 = vlaneseq
    %v564 = vshrl.u32 %v563, 7
    %v565 = vsub.s32 5, %v564
    %v566 = vrot.slane %v160, %v565
    %v567 = vmul.f32 %v549, %v566
    %v568 = vmul.f32 %v553, %v566
    %v569 = vmul.f32 %v557, %v566
    %v570 = vmul.f32 %v561, %v566
    %v571 = vadd.f32 %v543, %v567
    %v572 = vadd.f32 %v544, %v568
    %v573 = vadd.f32 %v545, %v569
    %v574 = vadd.f32 %v546, %v570
    %575 = vset.pattern.permute.xlu0 14
    %576 = vperm.xlu0 %575, %v43
    %v577 = vpop.permute.xlu0 %576
    %579 = vset.pattern.permute.xlu0 14
    %580 = vperm.xlu0 %579, %v44
    %v581 = vpop.permute.xlu0 %580
    %583 = vset.pattern.permute.xlu0 14
    %584 = vperm.xlu0 %583, %v45
    %v585 = vpop.permute.xlu0 %584
    %587 = vset.pattern.permute.xlu0 14
    %588 = vperm.xlu0 %587, %v46
    %v589 = vpop.permute.xlu0 %588
    %v591 = vlaneseq
    %v592 = vshrl.u32 %v591, 7
    %v593 = vsub.s32 6, %v592
    %v594 = vrot.slane %v160, %v593
    %v595 = vmul.f32 %v577, %v594
    %v596 = vmul.f32 %v581, %v594
    %v597 = vmul.f32 %v585, %v594
    %v598 = vmul.f32 %v589, %v594
    %v599 = vadd.f32 %v571, %v595
    %v600 = vadd.f32 %v572, %v596
    %v601 = vadd.f32 %v573, %v597
    %v602 = vadd.f32 %v574, %v598
    %603 = vset.pattern.permute.xlu0 15
    %604 = vperm.xlu0 %603, %v43
    %v605 = vpop.permute.xlu0 %604
    %607 = vset.pattern.permute.xlu0 15
    %608 = vperm.xlu0 %607, %v44
    %v609 = vpop.permute.xlu0 %608
    %611 = vset.pattern.permute.xlu0 15
    %612 = vperm.xlu0 %611, %v45
    %v613 = vpop.permute.xlu0 %612
    %615 = vset.pattern.permute.xlu0 15
    %616 = vperm.xlu0 %615, %v46
    %v617 = vpop.permute.xlu0 %616
    %v619 = vlaneseq
    %v620 = vshrl.u32 %v619, 7
    %v621 = vsub.s32 7, %v620
    %v622 = vrot.slane %v160, %v621
    %v623 = vmul.f32 %v605, %v622
    %v624 = vmul.f32 %v609, %v622
    %v625 = vmul.f32 %v613, %v622
    %v626 = vmul.f32 %v617, %v622
    %v627 = vadd.f32 %v599, %v623
    %v628 = vadd.f32 %v600, %v624
    %v629 = vadd.f32 %v601, %v625
    %v630 = vadd.f32 %v602, %v626
    %631 = vset.pattern.permute.xlu0 16
    %632 = vperm.xlu0 %631, %v43
    %v633 = vpop.permute.xlu0 %632
    %635 = vset.pattern.permute.xlu0 16
    %636 = vperm.xlu0 %635, %v44
    %v637 = vpop.permute.xlu0 %636
    %639 = vset.pattern.permute.xlu0 16
    %640 = vperm.xlu0 %639, %v45
    %v641 = vpop.permute.xlu0 %640
    %643 = vset.pattern.permute.xlu0 16
    %644 = vperm.xlu0 %643, %v46
    %v645 = vpop.permute.xlu0 %644
    %v647 = vlaneseq
    %v648 = vshrl.u32 %v647, 7
    %v649 = vsub.s32 0, %v648
    %v650 = vrot.slane %v161, %v649
    %v651 = vmul.f32 %v633, %v650
    %v652 = vmul.f32 %v637, %v650
    %v653 = vmul.f32 %v641, %v650
    %v654 = vmul.f32 %v645, %v650
    %v655 = vadd.f32 %v627, %v651
    %v656 = vadd.f32 %v628, %v652
    %v657 = vadd.f32 %v629, %v653
    %v658 = vadd.f32 %v630, %v654
    %659 = vset.pattern.permute.xlu0 17
    %660 = vperm.xlu0 %659, %v43
    %v661 = vpop.permute.xlu0 %660
    %663 = vset.pattern.permute.xlu0 17
    %664 = vperm.xlu0 %663, %v44
    %v665 = vpop.permute.xlu0 %664
    %667 = vset.pattern.permute.xlu0 17
    %668 = vperm.xlu0 %667, %v45
    %v669 = vpop.permute.xlu0 %668
    %671 = vset.pattern.permute.xlu0 17
    %672 = vperm.xlu0 %671, %v46
    %v673 = vpop.permute.xlu0 %672
    %v675 = vlaneseq
    %v676 = vshrl.u32 %v675, 7
    %v677 = vsub.s32 1, %v676
    %v678 = vrot.slane %v161, %v677
    %v679 = vmul.f32 %v661, %v678
    %v680 = vmul.f32 %v665, %v678
    %v681 = vmul.f32 %v669, %v678
    %v682 = vmul.f32 %v673, %v678
    %v683 = vadd.f32 %v655, %v679
    %v684 = vadd.f32 %v656, %v680
    %v685 = vadd.f32 %v657, %v681
    %v686 = vadd.f32 %v658, %v682
    %687 = vset.pattern.permute.xlu0 18
    %688 = vperm.xlu0 %687, %v43
    %v689 = vpop.permute.xlu0 %688
    %691 = vset.pattern.permute.xlu0 18
    %692 = vperm.xlu0 %691, %v44
    %v693 = vpop.permute.xlu0 %692
    %695 = vset.pattern.permute.xlu0 18
    %696 = vperm.xlu0 %695, %v45
    %v697 = vpop.permute.xlu0 %696
    %699 = vset.pattern.permute.xlu0 18
    %700 = vperm.xlu0 %699, %v46
    %v701 = vpop.permute.xlu0 %700
    %v703 = vlaneseq
    %v704 = vshrl.u32 %v703, 7
    %v705 = vsub.s32 2, %v704
    %v706 = vrot.slane %v161, %v705
    %v707 = vmul.f32 %v689, %v706
    %v708 = vmul.f32 %v693, %v706
    %v709 = vmul.f32 %v697, %v706
    %v710 = vmul.f32 %v701, %v706
    %v711 = vadd.f32 %v683, %v707
    %v712 = vadd.f32 %v684, %v708
    %v713 = vadd.f32 %v685, %v709
    %v714 = vadd.f32 %v686, %v710
    %715 = vset.pattern.permute.xlu0 19
    %716 = vperm.xlu0 %715, %v43
    %v717 = vpop.permute.xlu0 %716
    %719 = vset.pattern.permute.xlu0 19
    %720 = vperm.xlu0 %719, %v44
    %v721 = vpop.permute.xlu0 %720
    %723 = vset.pattern.permute.xlu0 19
    %724 = vperm.xlu0 %723, %v45
    %v725 = vpop.permute.xlu0 %724
    %727 = vset.pattern.permute.xlu0 19
    %728 = vperm.xlu0 %727, %v46
    %v729 = vpop.permute.xlu0 %728
    %v731 = vlaneseq
    %v732 = vshrl.u32 %v731, 7
    %v733 = vsub.s32 3, %v732
    %v734 = vrot.slane %v161, %v733
    %v735 = vmul.f32 %v717, %v734
    %v736 = vmul.f32 %v721, %v734
    %v737 = vmul.f32 %v725, %v734
    %v738 = vmul.f32 %v729, %v734
    %v739 = vadd.f32 %v711, %v735
    %v740 = vadd.f32 %v712, %v736
    %v741 = vadd.f32 %v713, %v737
    %v742 = vadd.f32 %v714, %v738
    %743 = vset.pattern.permute.xlu0 20
    %744 = vperm.xlu0 %743, %v43
    %v745 = vpop.permute.xlu0 %744
    %747 = vset.pattern.permute.xlu0 20
    %748 = vperm.xlu0 %747, %v44
    %v749 = vpop.permute.xlu0 %748
    %751 = vset.pattern.permute.xlu0 20
    %752 = vperm.xlu0 %751, %v45
    %v753 = vpop.permute.xlu0 %752
    %755 = vset.pattern.permute.xlu0 20
    %756 = vperm.xlu0 %755, %v46
    %v757 = vpop.permute.xlu0 %756
    %v759 = vlaneseq
    %v760 = vshrl.u32 %v759, 7
    %v761 = vsub.s32 4, %v760
    %v762 = vrot.slane %v161, %v761
    %v763 = vmul.f32 %v745, %v762
    %v764 = vmul.f32 %v749, %v762
    %v765 = vmul.f32 %v753, %v762
    %v766 = vmul.f32 %v757, %v762
    %v767 = vadd.f32 %v739, %v763
    %v768 = vadd.f32 %v740, %v764
    %v769 = vadd.f32 %v741, %v765
    %v770 = vadd.f32 %v742, %v766
    %771 = vset.pattern.permute.xlu0 21
    %772 = vperm.xlu0 %771, %v43
    %v773 = vpop.permute.xlu0 %772
    %775 = vset.pattern.permute.xlu0 21
    %776 = vperm.xlu0 %775, %v44
    %v777 = vpop.permute.xlu0 %776
    %779 = vset.pattern.permute.xlu0 21
    %780 = vperm.xlu0 %779, %v45
    %v781 = vpop.permute.xlu0 %780
    %783 = vset.pattern.permute.xlu0 21
    %784 = vperm.xlu0 %783, %v46
    %v785 = vpop.permute.xlu0 %784
    %v787 = vlaneseq
    %v788 = vshrl.u32 %v787, 7
    %v789 = vsub.s32 5, %v788
    %v790 = vrot.slane %v161, %v789
    %v791 = vmul.f32 %v773, %v790
    %v792 = vmul.f32 %v777, %v790
    %v793 = vmul.f32 %v781, %v790
    %v794 = vmul.f32 %v785, %v790
    %v795 = vadd.f32 %v767, %v791
    %v796 = vadd.f32 %v768, %v792
    %v797 = vadd.f32 %v769, %v793
    %v798 = vadd.f32 %v770, %v794
    %799 = vset.pattern.permute.xlu0 22
    %800 = vperm.xlu0 %799, %v43
    %v801 = vpop.permute.xlu0 %800
    %803 = vset.pattern.permute.xlu0 22
    %804 = vperm.xlu0 %803, %v44
    %v805 = vpop.permute.xlu0 %804
    %807 = vset.pattern.permute.xlu0 22
    %808 = vperm.xlu0 %807, %v45
    %v809 = vpop.permute.xlu0 %808
    %811 = vset.pattern.permute.xlu0 22
    %812 = vperm.xlu0 %811, %v46
    %v813 = vpop.permute.xlu0 %812
    %v815 = vlaneseq
    %v816 = vshrl.u32 %v815, 7
    %v817 = vsub.s32 6, %v816
    %v818 = vrot.slane %v161, %v817
    %v819 = vmul.f32 %v801, %v818
    %v820 = vmul.f32 %v805, %v818
    %v821 = vmul.f32 %v809, %v818
    %v822 = vmul.f32 %v813, %v818
    %v823 = vadd.f32 %v795, %v819
    %v824 = vadd.f32 %v796, %v820
    %v825 = vadd.f32 %v797, %v821
    %v826 = vadd.f32 %v798, %v822
    %827 = vset.pattern.permute.xlu0 23
    %828 = vperm.xlu0 %827, %v43
    %v829 = vpop.permute.xlu0 %828
    %831 = vset.pattern.permute.xlu0 23
    %832 = vperm.xlu0 %831, %v44
    %v833 = vpop.permute.xlu0 %832
    %835 = vset.pattern.permute.xlu0 23
    %836 = vperm.xlu0 %835, %v45
    %v837 = vpop.permute.xlu0 %836
    %839 = vset.pattern.permute.xlu0 23
    %840 = vperm.xlu0 %839, %v46
    %v841 = vpop.permute.xlu0 %840
    %v843 = vlaneseq
    %v844 = vshrl.u32 %v843, 7
    %v845 = vsub.s32 7, %v844
    %v846 = vrot.slane %v161, %v845
    %v847 = vmul.f32 %v829, %v846
    %v848 = vmul.f32 %v833, %v846
    %v849 = vmul.f32 %v837, %v846
    %v850 = vmul.f32 %v841, %v846
    %v851 = vadd.f32 %v823, %v847
    %v852 = vadd.f32 %v824, %v848
    %v853 = vadd.f32 %v825, %v849
    %v854 = vadd.f32 %v826, %v850
    %855 = vset.pattern.permute.xlu0 24
    %856 = vperm.xlu0 %855, %v43
    %v857 = vpop.permute.xlu0 %856
    %859 = vset.pattern.permute.xlu0 24
    %860 = vperm.xlu0 %859, %v44
    %v861 = vpop.permute.xlu0 %860
    %863 = vset.pattern.permute.xlu0 24
    %864 = vperm.xlu0 %863, %v45
    %v865 = vpop.permute.xlu0 %864
    %867 = vset.pattern.permute.xlu0 24
    %868 = vperm.xlu0 %867, %v46
    %v869 = vpop.permute.xlu0 %868
    %v871 = vlaneseq
    %v872 = vshrl.u32 %v871, 7
    %v873 = vsub.s32 0, %v872
    %v874 = vrot.slane %v162, %v873
    %v875 = vmul.f32 %v857, %v874
    %v876 = vmul.f32 %v861, %v874
    %v877 = vmul.f32 %v865, %v874
    %v878 = vmul.f32 %v869, %v874
    %v879 = vadd.f32 %v851, %v875
    %v880 = vadd.f32 %v852, %v876
    %v881 = vadd.f32 %v853, %v877
    %v882 = vadd.f32 %v854, %v878
    %883 = vset.pattern.permute.xlu0 25
    %884 = vperm.xlu0 %883, %v43
    %v885 = vpop.permute.xlu0 %884
    %887 = vset.pattern.permute.xlu0 25
    %888 = vperm.xlu0 %887, %v44
    %v889 = vpop.permute.xlu0 %888
    %891 = vset.pattern.permute.xlu0 25
    %892 = vperm.xlu0 %891, %v45
    %v893 = vpop.permute.xlu0 %892
    %895 = vset.pattern.permute.xlu0 25
    %896 = vperm.xlu0 %895, %v46
    %v897 = vpop.permute.xlu0 %896
    %v899 = vlaneseq
    %v900 = vshrl.u32 %v899, 7
    %v901 = vsub.s32 1, %v900
    %v902 = vrot.slane %v162, %v901
    %v903 = vmul.f32 %v885, %v902
    %v904 = vmul.f32 %v889, %v902
    %v905 = vmul.f32 %v893, %v902
    %v906 = vmul.f32 %v897, %v902
    %v907 = vadd.f32 %v879, %v903
    %v908 = vadd.f32 %v880, %v904
    %v909 = vadd.f32 %v881, %v905
    %v910 = vadd.f32 %v882, %v906
    %911 = vset.pattern.permute.xlu0 26
    %912 = vperm.xlu0 %911, %v43
    %v913 = vpop.permute.xlu0 %912
    %915 = vset.pattern.permute.xlu0 26
    %916 = vperm.xlu0 %915, %v44
    %v917 = vpop.permute.xlu0 %916
    %919 = vset.pattern.permute.xlu0 26
    %920 = vperm.xlu0 %919, %v45
    %v921 = vpop.permute.xlu0 %920
    %923 = vset.pattern.permute.xlu0 26
    %924 = vperm.xlu0 %923, %v46
    %v925 = vpop.permute.xlu0 %924
    %v927 = vlaneseq
    %v928 = vshrl.u32 %v927, 7
    %v929 = vsub.s32 2, %v928
    %v930 = vrot.slane %v162, %v929
    %v931 = vmul.f32 %v913, %v930
    %v932 = vmul.f32 %v917, %v930
    %v933 = vmul.f32 %v921, %v930
    %v934 = vmul.f32 %v925, %v930
    %v935 = vadd.f32 %v907, %v931
    %v936 = vadd.f32 %v908, %v932
    %v937 = vadd.f32 %v909, %v933
    %v938 = vadd.f32 %v910, %v934
    %939 = vset.pattern.permute.xlu0 27
    %940 = vperm.xlu0 %939, %v43
    %v941 = vpop.permute.xlu0 %940
    %943 = vset.pattern.permute.xlu0 27
    %944 = vperm.xlu0 %943, %v44
    %v945 = vpop.permute.xlu0 %944
    %947 = vset.pattern.permute.xlu0 27
    %948 = vperm.xlu0 %947, %v45
    %v949 = vpop.permute.xlu0 %948
    %951 = vset.pattern.permute.xlu0 27
    %952 = vperm.xlu0 %951, %v46
    %v953 = vpop.permute.xlu0 %952
    %v955 = vlaneseq
    %v956 = vshrl.u32 %v955, 7
    %v957 = vsub.s32 3, %v956
    %v958 = vrot.slane %v162, %v957
    %v959 = vmul.f32 %v941, %v958
    %v960 = vmul.f32 %v945, %v958
    %v961 = vmul.f32 %v949, %v958
    %v962 = vmul.f32 %v953, %v958
    %v963 = vadd.f32 %v935, %v959
    %v964 = vadd.f32 %v936, %v960
    %v965 = vadd.f32 %v937, %v961
    %v966 = vadd.f32 %v938, %v962
    %967 = vset.pattern.permute.xlu0 28
    %968 = vperm.xlu0 %967, %v43
    %v969 = vpop.permute.xlu0 %968
    %971 = vset.pattern.permute.xlu0 28
    %972 = vperm.xlu0 %971, %v44
    %v973 = vpop.permute.xlu0 %972
    %975 = vset.pattern.permute.xlu0 28
    %976 = vperm.xlu0 %975, %v45
    %v977 = vpop.permute.xlu0 %976
    %979 = vset.pattern.permute.xlu0 28
    %980 = vperm.xlu0 %979, %v46
    %v981 = vpop.permute.xlu0 %980
    %v983 = vlaneseq
    %v984 = vshrl.u32 %v983, 7
    %v985 = vsub.s32 4, %v984
    %v986 = vrot.slane %v162, %v985
    %v987 = vmul.f32 %v969, %v986
    %v988 = vmul.f32 %v973, %v986
    %v989 = vmul.f32 %v977, %v986
    %v990 = vmul.f32 %v981, %v986
    %v991 = vadd.f32 %v963, %v987
    %v992 = vadd.f32 %v964, %v988
    %v993 = vadd.f32 %v965, %v989
    %v994 = vadd.f32 %v966, %v990
    %995 = vset.pattern.permute.xlu0 29
    %996 = vperm.xlu0 %995, %v43
    %v997 = vpop.permute.xlu0 %996
    %999 = vset.pattern.permute.xlu0 29
    %1000 = vperm.xlu0 %999, %v44
    %v1001 = vpop.permute.xlu0 %1000
    %1003 = vset.pattern.permute.xlu0 29
    %1004 = vperm.xlu0 %1003, %v45
    %v1005 = vpop.permute.xlu0 %1004
    %1007 = vset.pattern.permute.xlu0 29
    %1008 = vperm.xlu0 %1007, %v46
    %v1009 = vpop.permute.xlu0 %1008
    %v1011 = vlaneseq
    %v1012 = vshrl.u32 %v1011, 7
    %v1013 = vsub.s32 5, %v1012
    %v1014 = vrot.slane %v162, %v1013
    %v1015 = vmul.f32 %v997, %v1014
    %v1016 = vmul.f32 %v1001, %v1014
    %v1017 = vmul.f32 %v1005, %v1014
    %v1018 = vmul.f32 %v1009, %v1014
    %v1019 = vadd.f32 %v991, %v1015
    %v1020 = vadd.f32 %v992, %v1016
    %v1021 = vadd.f32 %v993, %v1017
    %v1022 = vadd.f32 %v994, %v1018
    %1023 = vset.pattern.permute.xlu0 30
    %1024 = vperm.xlu0 %1023, %v43
    %v1025 = vpop.permute.xlu0 %1024
    %1027 = vset.pattern.permute.xlu0 30
    %1028 = vperm.xlu0 %1027, %v44
    %v1029 = vpop.permute.xlu0 %1028
    %1031 = vset.pattern.permute.xlu0 30
    %1032 = vperm.xlu0 %1031, %v45
    %v1033 = vpop.permute.xlu0 %1032
    %1035 = vset.pattern.permute.xlu0 30
    %1036 = vperm.xlu0 %1035, %v46
    %v1037 = vpop.permute.xlu0 %1036
    %v1039 = vlaneseq
    %v1040 = vshrl.u32 %v1039, 7
    %v1041 = vsub.s32 6, %v1040
    %v1042 = vrot.slane %v162, %v1041
    %v1043 = vmul.f32 %v1025, %v1042
    %v1044 = vmul.f32 %v1029, %v1042
    %v1045 = vmul.f32 %v1033, %v1042
    %v1046 = vmul.f32 %v1037, %v1042
    %v1047 = vadd.f32 %v1019, %v1043
    %v1048 = vadd.f32 %v1020, %v1044
    %v1049 = vadd.f32 %v1021, %v1045
    %v1050 = vadd.f32 %v1022, %v1046
    %1051 = vset.pattern.permute.xlu0 31
    %1052 = vperm.xlu0 %1051, %v43
    %v1053 = vpop.permute.xlu0 %1052
    %1055 = vset.pattern.permute.xlu0 31
    %1056 = vperm.xlu0 %1055, %v44
    %v1057 = vpop.permute.xlu0 %1056
    %1059 = vset.pattern.permute.xlu0 31
    %1060 = vperm.xlu0 %1059, %v45
    %v1061 = vpop.permute.xlu0 %1060
    %1063 = vset.pattern.permute.xlu0 31
    %1064 = vperm.xlu0 %1063, %v46
    %v1065 = vpop.permute.xlu0 %1064
    %v1067 = vlaneseq
    %v1068 = vshrl.u32 %v1067, 7
    %v1069 = vsub.s32 7, %v1068
    %v1070 = vrot.slane %v162, %v1069
    %v1071 = vmul.f32 %v1053, %v1070
    %v1072 = vmul.f32 %v1057, %v1070
    %v1073 = vmul.f32 %v1061, %v1070
    %v1074 = vmul.f32 %v1065, %v1070
    %v1075 = vadd.f32 %v1047, %v1071
    %v1076 = vadd.f32 %v1048, %v1072
    %v1077 = vadd.f32 %v1049, %v1073
    %v1078 = vadd.f32 %v1050, %v1074
    %v1079 = vmax.f32 %v1075, 0.0
    %v1080 = vmax.f32 %v1076, 0.0
    %v1081 = vmax.f32 %v1077, 0.0
    %v1082 = vmax.f32 %v1078, 0.0
    %1083 = vset.pattern.permute.xlu0 2
    %1084 = vperm.xlu0 %1083, %v47
    %v1085 = vpop.permute.xlu0 %1084
    %1087 = vset.pattern.permute.xlu0 2
    %1088 = vperm.xlu0 %1087, %v48
    %v1089 = vpop.permute.xlu0 %1088
    %1091 = vset.pattern.permute.xlu0 2
    %1092 = vperm.xlu0 %1091, %v49
    %v1093 = vpop.permute.xlu0 %1092
    %1095 = vset.pattern.permute.xlu0 2
    %1096 = vperm.xlu0 %1095, %v50
    %v1097 = vpop.permute.xlu0 %1096
    %v1099 = vmul.f32 %v1079, %v1085
    %v1100 = vmul.f32 %v1080, %v1089
    %v1101 = vmul.f32 %v1081, %v1093
    %v1102 = vmul.f32 %v1082, %v1097
    %vm1103 = vcmask 64512
    %v1104 = vsel %vm1103, %v1099, 0.0
    %v1105 = vsel %vm1103, %v1100, 0.0
    %v1106 = vadd.f32 %v1104, %v1105
    %v1107 = vsel %vm1103, %v1101, 0.0
    %v1108 = vadd.f32 %v1106, %v1107
    %v1109 = vsel %vm1103, %v1102, 0.0
    %v1110 = vadd.f32 %v1108, %v1109
    %v1111 = vrot.slane %v1110, 4
    %v1112 = vadd.f32 %v1110, %v1111
    %v1113 = vrot.slane %v1112, 2
    %v1114 = vadd.f32 %v1112, %v1113
    %v1115 = vrot.slane %v1114, 1
    %v1116 = vadd.f32 %v1114, %v1115
    %1117 = vset.pattern.permute.xlu0 3
    %1118 = vperm.xlu0 %1117, %v47
    %v1119 = vpop.permute.xlu0 %1118
    %v1121 = vadd.f32 %v1116, %v1119
    %vm1122 = vcmask 57344
    %1123 = vst.msk [vmem:[#allocation7] sm:$0x1] %vm1122, %v1121
    // Predicated region
    $region18: #{critic_v_forward.1} parent=1 // pred_check
      _
    $region19: #{critic_v_forward.1} parent=1 // pred_check_branch
      %1125 = sbr.rel (0) target = $region21
    $region20: #{critic_v_forward.1} parent=1 // pred_region
      %s1127 = ssub.s32 16, 16
      %1128 = vsyncadd [#allocation4], %s1127
      %s1130 = sshll.u32 [#allocation7], 4
      %s1131 = int_to_ptr.vmem [resolvable:$true] %s1130
      %1133 = dma.vmem_to_hbm [thread:$0]  %s1131, 16, %s2, [#allocation4]
    $region21: #{critic_v_forward.1} parent=1 // pred_fallthru
      _
    // Predicated region
    $region22: #{critic_v_forward.1} parent=1 // pred_check
      _
    $region23: #{critic_v_forward.1} parent=1 // pred_check_branch
      %1135 = sbr.rel (0) target = $region25
    $region24: #{critic_v_forward.1} parent=1 // pred_region
      %1136 = dma.done [#allocation4], 16
    $region25: #{critic_v_forward.1} parent=1 // pred_fallthru
      _
    %1137 = vsyncpa [#allocation3], 1
    %1138 = vsyncpa [#allocation6], 1
    %1139 = vsyncpa [#allocation4], 1

</llo_original>
